<compile_context>
chip_gen: v5e
topology: v5e:2x2
jax: 0.10.0
libtpu: 0.0.40
codegen_flags: <defaults>
</compile_context>

<pallas_src>
import jax
import jax.numpy as jnp
from jax.experimental import pallas as pl
from jax.experimental.pallas import tpu as pltpu


def noise_injection_kernel(w_ref, x_ref, n_ref, o_ref):
    # Pure VPU broadcast-mul + add on dense tiles; shared by the 2-D and 3-D paths.
    o_ref[...] = (x_ref[...] + w_ref[...] * n_ref[...]).astype(o_ref.dtype)


def _round_down(x, m):
    return (x // m) * m


def _largest_divisor_leq(n, cap):
    cap = max(1, min(int(cap), n))
    for d in range(cap, 0, -1):
        if n % d == 0:
            return d
    return 1


def _vmem_capacity_bytes():
    """Physical VMEM per TensorCore; conservative 64 MiB (v7x) fallback."""
    try:
        info = pltpu.get_tpu_info()
        for name in ("vmem_capacity_bytes", "vmem_size_bytes", "vmem_bytes"):
            cap = getattr(info, name, None)
            if cap:
                return int(cap)
    except Exception:
        pass
    return 64 << 20


def _vmem_limit(vmem_cap, stream_block_bytes):
    # image/noise/out double-buffered + weight + headroom, kept below physical.
    needed = 6 * stream_block_bytes + (2 << 20)
    return int(min(max(2 * needed, 32 << 20), vmem_cap - (4 << 20)))


def _pick_lane_tile(L, lane_budget_elems):
    """Lane-dense tile along the last dim.
    Full L if it fits the per-block budget (full-dim blocks are always legal);
    otherwise the largest multiple of 128 within the budget (tail block masked)."""
    if L <= 128:
        return L
    budget = max(int(lane_budget_elems), 128)
    if L <= budget:
        return L
    return max(_round_down(min(budget, L), 128), 128)


def noise_injection_1d(image, weight, noise, *, block_bytes_target=4 << 20):
    """image: (N, C, L); weight: (1, C, 1); noise: (N, 1, L) or (N, C, L)."""
    N, C, L = image.shape
    assert weight.shape == (1, C, 1), weight.shape
    Cn = noise.shape[1]
    assert noise.shape == (N, Cn, L) and Cn in (1, C), noise.shape

    x_item = jnp.dtype(image.dtype).itemsize
    n_item = jnp.dtype(noise.dtype).itemsize
    w_item = jnp.dtype(weight.dtype).itemsize
    itemsize = max(x_item, n_item, w_item)

    # Per-stream block budget: 3 streams double-buffered must stay well inside VMEM.
    vmem_cap = _vmem_capacity_bytes()
    block_bytes = max(min(block_bytes_target, vmem_cap // 8), 8 * 128 * itemsize)

    cost = pl.CostEstimate(
        flops=2 * N * C * L,  # mul + add per output element
        transcendentals=0,
        bytes_accessed=(N * C * L * (x_item + x_item)      # image read + out write
                        + N * Cn * L * n_item               # noise read
                        + C * w_item),                      # weight read
    )
    compiler_kwargs = dict(dimension_semantics=("parallel", "parallel"))

    if Cn == C:
        # Flatten (N, C) onto the sublane axis -> dense (rows, L) tiles even for tiny C.
        R = N * C
        x2 = image.reshape(R, L)
        n2 = noise.reshape(R, L)
        w2 = jnp.broadcast_to(weight.reshape(1, C), (N, C)).reshape(R, 1)  # tiny

        tile_l = _pick_lane_tile(L, block_bytes // (8 * itemsize))
        rows_target = max(block_bytes // max(tile_l * itemsize, 1), 1)
        if rows_target >= R or R <= 8:
            br = R                                  # full-dim block (always legal)
        else:
            br = max(_round_down(min(rows_target, R), 8), 8)
        grid = (pl.cdiv(R, br), pl.cdiv(L, tile_l))

        out2 = pl.pallas_call(
            noise_injection_kernel,
            out_shape=jax.ShapeDtypeStruct((R, L), image.dtype),
            grid_spec=pltpu.PrefetchScalarGridSpec(
                num_scalar_prefetch=0,
                grid=grid,
                in_specs=[
                    pl.BlockSpec((br, 1), lambda i, j: (i, 0)),
                    pl.BlockSpec((br, tile_l), lambda i, j: (i, j)),
                    pl.BlockSpec((br, tile_l), lambda i, j: (i, j)),
                ],
                out_specs=pl.BlockSpec((br, tile_l), lambda i, j: (i, j)),
            ),
            compiler_params=pltpu.CompilerParams(
                vmem_limit_bytes=_vmem_limit(vmem_cap, br * tile_l * itemsize),
                **compiler_kwargs,
            ),
            cost_estimate=cost,
        )(w2, x2, n2)
        return out2.reshape(N, C, L)

    # Cn == 1: keep the 3-D layout; noise broadcasts over channels in-kernel.
    tile_l = _pick_lane_tile(L, block_bytes // max(C * itemsize, 1))
    bn_target = max(block_bytes // max(C * tile_l * itemsize, 1), 1)
    bn = _largest_divisor_leq(N, bn_target)
    grid = (N // bn, pl.cdiv(L, tile_l))

    return pl.pallas_call(
        noise_injection_kernel,
        out_shape=jax.ShapeDtypeStruct((N, C, L), image.dtype),
        grid_spec=pltpu.PrefetchScalarGridSpec(
            num_scalar_prefetch=0,
            grid=grid,
            in_specs=[
                pl.BlockSpec((1, C, 1), lambda i, j: (0, 0, 0)),        # weight (constant)
                pl.BlockSpec((bn, C, tile_l), lambda i, j: (i, 0, j)),  # image
                pl.BlockSpec((bn, 1, tile_l), lambda i, j: (i, 0, j)),  # noise (Cn == 1)
            ],
            out_specs=pl.BlockSpec((bn, C, tile_l), lambda i, j: (i, 0, j)),
        ),
        compiler_params=pltpu.CompilerParams(
            vmem_limit_bytes=_vmem_limit(vmem_cap, bn * C * tile_l * itemsize),
            **compiler_kwargs,
        ),
        cost_estimate=cost,
    )(weight, image, noise)


def noise_injection_ref(image, weight, noise):
    # pure-JAX reference (matches PyTorch: image + weight * noise)
    return image + weight * noise


if __name__ == "__main__":
    key = jax.random.PRNGKey(0)
    k1, k2, k3, k4 = jax.random.split(key, 4)

    N, C, L = 2, 4, 256
    image = jax.random.normal(k1, (N, C, L), dtype=jnp.float32)
    # PyTorch inits the parameter to zeros; use random values so the test is non-trivial.
    weight = jax.random.normal(k3, (1, C, 1), dtype=jnp.float32)

    # Path 1: per-batch broadcast noise (N, 1, L) -> batched 3-D blocks.
    noise_b = jax.random.normal(k2, (N, 1, L), dtype=jnp.float32)
    out_b = jax.block_until_ready(noise_injection_1d(image, weight, noise_b))
    ref_b = noise_injection_ref(image, weight, noise_b)
    assert out_b.shape == image.shape and out_b.dtype == image.dtype
    assert jnp.allclose(out_b, ref_b, atol=1e-6, rtol=1e-6), "mismatch (Cn=1 path)"

    # Path 2: full-channel noise (N, C, L) -> flattened sublane-dense 2-D blocks.
    noise_f = jax.random.normal(k4, (N, C, L), dtype=jnp.float32)
    out_f = jax.block_until_ready(noise_injection_1d(image, weight, noise_f))
    ref_f = noise_injection_ref(image, weight, noise_f)
    assert out_f.shape == image.shape and out_f.dtype == image.dtype
    assert jnp.allclose(out_f, ref_f, atol=1e-6, rtol=1e-6), "mismatch (Cn=C path)"

    print("KERNEL_OK")
</pallas_src>

<mosaic_0001>
module attributes {stable_mosaic.version = 11 : i64} {
  func.func @noise_injection_kernel(%arg0: i32, %arg1: i32, %arg2: memref<1x4x1xf32, #tpu.memory_space<vmem>>, %arg3: memref<2x4x256xf32, #tpu.memory_space<vmem>>, %arg4: memref<2x1x256xf32, #tpu.memory_space<vmem>>, %arg5: memref<2x4x256xf32, #tpu.memory_space<vmem>>) attributes {dimension_semantics = [#tpu.dimension_semantics<parallel>, #tpu.dimension_semantics<parallel>], iteration_bounds = array<i64: 1, 1>, scalar_prefetch = 0 : i64, scratch_operands = 0 : i64, tpu.core_type = #tpu.core_type<tc>, window_params = [{pipeline_mode = #tpu.pipeline_mode<synchronous>, transform_indices = @transform_0, window_bounds = array<i64: 1, 4, 1>}, {transform_indices = @transform_1, window_bounds = array<i64: 2, 4, 256>}, {transform_indices = @transform_2, window_bounds = array<i64: 2, 1, 256>}, {transform_indices = @transform_3, window_bounds = array<i64: 2, 4, 256>}]} {
    %c0 = arith.constant 0 : index
    %c0_0 = arith.constant 0 : index
    %c0_1 = arith.constant 0 : index
    %0 = vector.load %arg3[%c0, %c0_0, %c0_1] : memref<2x4x256xf32, #tpu.memory_space<vmem>>, vector<2x4x256xf32>
    %c0_2 = arith.constant 0 : index
    %c0_3 = arith.constant 0 : index
    %c0_4 = arith.constant 0 : index
    %1 = vector.load %arg2[%c0_2, %c0_3, %c0_4] : memref<1x4x1xf32, #tpu.memory_space<vmem>>, vector<1x4x1xf32>
    %c0_5 = arith.constant 0 : index
    %c0_6 = arith.constant 0 : index
    %c0_7 = arith.constant 0 : index
    %2 = vector.load %arg4[%c0_5, %c0_6, %c0_7] : memref<2x1x256xf32, #tpu.memory_space<vmem>>, vector<2x1x256xf32>
    %3 = vector.broadcast %1 : vector<1x4x1xf32> to vector<2x4x256xf32>
    %4 = vector.broadcast %2 : vector<2x1x256xf32> to vector<2x4x256xf32>
    %5 = arith.mulf %3, %4 : vector<2x4x256xf32>
    %6 = arith.addf %0, %5 : vector<2x4x256xf32>
    %c0_8 = arith.constant 0 : index
    %c0_9 = arith.constant 0 : index
    %c0_10 = arith.constant 0 : index
    %7 = vector.load %arg5[%c0_8, %c0_9, %c0_10] : memref<2x4x256xf32, #tpu.memory_space<vmem>>, vector<2x4x256xf32>
    tpu.vector_store %arg5[%c0_8, %c0_9, %c0_10], %6 {strides = array<i32>} : memref<2x4x256xf32, #tpu.memory_space<vmem>>, vector<2x4x256xf32>,
    return
  }
  func.func @transform_0(%arg0: i32, %arg1: i32) -> (i32, i32, i32) {
    %c0_i32 = arith.constant 0 : i32
    %c0_i32_0 = arith.constant 0 : i32
    %c0_i32_1 = arith.constant 0 : i32
    %c0_i32_2 = arith.constant 0 : i32
    return %c0_i32, %c0_i32_0, %c0_i32_1 : i32, i32, i32
  }
  func.func @transform_1(%arg0: i32, %arg1: i32) -> (i32, i32, i32) {
    %c0_i32 = arith.constant 0 : i32
    %c0_i32_0 = arith.constant 0 : i32
    return %arg0, %c0_i32, %arg1 : i32, i32, i32
  }
  func.func @transform_2(%arg0: i32, %arg1: i32) -> (i32, i32, i32) {
    %c0_i32 = arith.constant 0 : i32
    %c0_i32_0 = arith.constant 0 : i32
    return %arg0, %c0_i32, %arg1 : i32, i32, i32
  }
  func.func @transform_3(%arg0: i32, %arg1: i32) -> (i32, i32, i32) {
    %c0_i32 = arith.constant 0 : i32
    %c0_i32_0 = arith.constant 0 : i32
    return %arg0, %c0_i32, %arg1 : i32, i32, i32
  }
}

</mosaic_0001>

<llo_original>
// kernel: tpu_custom_call.1
$region0: #{tpu_custom_call.1}
  #allocation0 [shape = 'u32[]', space=smem, size = 0x4, offset = 0x4, fixed_abs, tag = 'smem constant byte address 0x4 - core index']
  #allocation1 [shape = 'u32[72,128]{1,0:T(1,128)}', space=vmem, size = 0x9000, scoped, tag = 'internal scratch']
  %s0 = inlined_call_operand.vmem [shape: f32[1,4,1], index: 0, kind: input, shape index: {}]
  %s1 = inlined_call_operand.hbm [shape: f32[2,4,256], index: 1, kind: input, shape index: {}]
  %s2 = inlined_call_operand.vmem [shape: f32[2,1,256], index: 2, kind: input, shape index: {}]
  %s3 = inlined_call_operand.hbm [shape: f32[2,4,256], index: 3, kind: output, shape index: {}]
  %s4 = sld [smem:[#allocation0]]
  $region26: #{tpu_custom_call.1} parent=0
    _
  %s6 = ssub.s32 1, %s4
  %s7 = scalar_select 0, %s6, %s4
  $region1: #{tpu_custom_call.1} parent=0
    #allocation2 [shape = 'u8[8192]{0}', space=vmem, size = 0x2000, scoped, tag = 'input window, operand 1, single buffered']
    #allocation3 [shape = 's32[1]{0}', space=sflag, size = 0x4, scoped, tag = 'scoped memory for tpu_custom_call.1']
    #allocation4 [shape = 's32[1]{0}', space=sflag, size = 0x4, scoped, tag = 'scoped memory for tpu_custom_call.1']
    #allocation5 [shape = 'u8[8192]{0}', space=vmem, size = 0x2000, scoped, tag = 'output window, operand 0, single buffered']
    %8 = vsyncpa [#allocation3], 0
    %9 = vsyncpa [#allocation4], 0
    // Predicated region
    $region2: #{tpu_custom_call.1} parent=1 // pred_check
      _
    $region3: #{tpu_custom_call.1} parent=1 // pred_check_branch
      %11 = sbr.rel (0) target = $region5
    $region4: #{tpu_custom_call.1} parent=1 // pred_region
      _
    $region5: #{tpu_custom_call.1} parent=1 // pred_fallthru
      _
    // Predicated region
    $region6: #{tpu_custom_call.1} parent=1 // pred_check
      _
    $region7: #{tpu_custom_call.1} parent=1 // pred_check_branch
      %13 = sbr.rel (0) target = $region9
    $region8: #{tpu_custom_call.1} parent=1 // pred_region
      %15 = vsyncadd [#allocation3], 0
      %s16 = sshll.u32 %s1, 4
      %s17 = int_to_ptr.hbm [resolvable:$true] %s16
      %s18 = sshll.u32 [#allocation2], 4
      %s19 = int_to_ptr.vmem [resolvable:$true] %s18
      %24 = dma.hbm_to_vmem [thread:$0]  %s17, 256, %s19, [#allocation3], 128, 128, 8
    $region9: #{tpu_custom_call.1} parent=1 // pred_fallthru
      _
    // Predicated region
    $region10: #{tpu_custom_call.1} parent=1 // pred_check
      _
    $region11: #{tpu_custom_call.1} parent=1 // pred_check_branch
      %26 = sbr.rel (0) target = $region13
    $region12: #{tpu_custom_call.1} parent=1 // pred_region
      _
    $region13: #{tpu_custom_call.1} parent=1 // pred_fallthru
      _
    // Predicated region
    $region14: #{tpu_custom_call.1} parent=1 // pred_check
      _
    $region15: #{tpu_custom_call.1} parent=1 // pred_check_branch
      %28 = sbr.rel (0) target = $region17
    $region16: #{tpu_custom_call.1} parent=1 // pred_region
      %30 = dma.done [#allocation3], 256
    $region17: #{tpu_custom_call.1} parent=1 // pred_fallthru
      _
    %v31 = vld [vmem:[#allocation2] sm:$0xff]
    %v32 = vld [vmem:[#allocation2 + $0x8] sm:$0xff]
    %v33 = vld [vmem:[%s0] sm:$0xf]
    %v34 = vld [vmem:[%s2] sm:$0x3]
    %v35 = vld [vmem:[%s2 + $0x2] sm:$0x3]
    %37 = vset.pattern.permute.xlu0 0
    %38 = vperm.xlu0 %37, %v33
    %v39 = vpop.permute.xlu0 %38
    %v43 = vperm.slane %v34, 0
    %v44 = vperm.slane %v34, 1
    %v45 = vperm.slane %v35, 0
    %v46 = vperm.slane %v35, 1
    %v51 = vmul.f32 %v39, %v43
    %v52 = vmul.f32 %v39, %v44
    %v53 = vmul.f32 %v39, %v45
    %v54 = vmul.f32 %v39, %v46
    %v59 = vrot.slane %v52, 4
    %v60 = vrot.slane %v54, 4
    %vm61 = vcmask 1043456
    %v62 = vsel %vm61, %v51, %v59
    %v63 = vsel %vm61, %v53, %v60
    %v66 = vadd.f32 %v31, %v62
    %v67 = vadd.f32 %v32, %v63
    %68 = vst [vmem:[#allocation5] sm:$0xff] %v66
    %69 = vst [vmem:[#allocation5 + $0x8] sm:$0xff] %v67
    // Predicated region
    $region18: #{tpu_custom_call.1} parent=1 // pred_check
      _
    $region19: #{tpu_custom_call.1} parent=1 // pred_check_branch
      %71 = sbr.rel (0) target = $region21
    $region20: #{tpu_custom_call.1} parent=1 // pred_region
      %73 = vsyncadd [#allocation4], 0
      %s74 = sshll.u32 [#allocation5], 4
      %s75 = int_to_ptr.vmem [resolvable:$true] %s74
      %s76 = sshll.u32 %s3, 4
      %s77 = int_to_ptr.hbm [resolvable:$true] %s76
      %82 = dma.vmem_to_hbm [thread:$0]  %s75, 256, %s77, [#allocation4], 128, 128, 8
    $region21: #{tpu_custom_call.1} parent=1 // pred_fallthru
      _
    // Predicated region
    $region22: #{tpu_custom_call.1} parent=1 // pred_check
      _
    $region23: #{tpu_custom_call.1} parent=1 // pred_check_branch
      %84 = sbr.rel (0) target = $region25
    $region24: #{tpu_custom_call.1} parent=1 // pred_region
      %86 = dma.done [#allocation4], 256
    $region25: #{tpu_custom_call.1} parent=1 // pred_fallthru
      _
    %87 = vsyncpa [#allocation3], 1
    %88 = vsyncpa [#allocation4], 1

</llo_original>
